<compile_context>
chip_gen: v7x
topology: tpu7x:2x2x1
jax: 0.10.0
libtpu: 0.0.40
codegen_flags: <defaults>
</compile_context>

<pallas_src>
import functools

import jax
import jax.numpy as jnp
from jax.experimental import pallas as pl
from jax.experimental.pallas import tpu as pltpu

COMPUTE_DTYPE = jnp.bfloat16     # storage / MXU dtype for activations & weights


# ----------------------------------------------------------------------------
# Per-chip VMEM budget (v7x: 64 MiB, v5e/v6e: 128 MiB).
# ----------------------------------------------------------------------------
def _vmem_capacity_bytes():
    try:
        return int(pltpu.get_tpu_info().vmem_capacity_bytes)
    except Exception:
        return 64 * 1024 * 1024          # conservative (v7x per-core VMEM)


_VMEM_CAP = _vmem_capacity_bytes()
_VMEM_LIMIT = max(32 * 1024 * 1024, min(int(_VMEM_CAP * 0.70), 100 * 1024 * 1024))


def _pick_t_cap(streams, cout, n_extra_res):
    """Largest time tile (lanes) whose double-buffered working set fits VMEM."""
    bpl = 0
    for (x, _w, K, _dil, _pl_, _pr, _pa) in streams:
        cin = x.shape[1]
        bpl += 2 * 2 * cin               # double-buffered main block (bf16)
        bpl += 2 * K * cin               # stacked matmul operand (bf16)
    bpl += 2 * 2 * cout                  # double-buffered output (bf16)
    bpl += 4 * cout                      # f32 accumulator / epilogue
    bpl += n_extra_res * 2 * 2 * cout    # double-buffered extra residuals
    budget = int(0.45 * _VMEM_LIMIT)
    cap = budget // max(bpl, 1)
    return max(256, min(4096, (cap // 128) * 128))


# ----------------------------------------------------------------------------
# Fused dilated conv1d kernel, (B, C, T) layout (lane-dense along T).
# y = W_folded @ stack_k(leaky(x)[:, k*dil : k*dil+T])  + bias
#     (+ input residual) (+ extra residuals), * out_scale, LeakyReLU / tanh.
# ----------------------------------------------------------------------------
def _fused_conv_kernel(*refs, stream_meta, tiled, t_blk, n_extra_res,
                       res_from_input, out_scale, post_alpha, post_tanh):
    n_streams = len(stream_meta)
    pos = 0
    x_main, x_halo = [], []
    for _ in range(n_streams):
        x_main.append(refs[pos]); pos += 1
        if tiled:
            x_halo.append(refs[pos]); pos += 1
        else:
            x_halo.append(None)
    w_refs = refs[pos:pos + n_streams]; pos += n_streams
    b_ref = refs[pos]; pos += 1
    extra_res = refs[pos:pos + n_extra_res]; pos += n_extra_res
    o_ref = refs[pos]
    cout = o_ref.shape[1]

    def raw_window(si, off):
        """Lanes [off, off + t_blk) of stream si's (conceptually padded) input."""
        K, dil, padl, padr, _ = stream_meta[si]
        xm = x_main[si][0]                               # (cin, main_width)
        if tiled:
            if off == 0:
                return xm
            xh = x_halo[si][0]                           # (cin, halo)
            return jnp.concatenate([xm[:, off:], xh[:, :off]], axis=-1)
        # single-block path: pad handled here with static zero edges (no XLA pad)
        cin, t_in = xm.shape
        lo, hi = off - padl, off - padl + t_blk
        a, b = max(lo, 0), min(hi, t_in)
        pieces = []
        if a > lo:
            pieces.append(jnp.zeros((cin, a - lo), xm.dtype))
        if b > a:
            pieces.append(xm[:, a:b])
        if hi > b:
            pieces.append(jnp.zeros((cin, hi - b), xm.dtype))
        return pieces[0] if len(pieces) == 1 else jnp.concatenate(pieces, axis=-1)

    acc = None
    for si, (K, dil, padl, padr, pre_alpha) in enumerate(stream_meta):
        cin = x_main[si].shape[1]
        w = w_refs[si][...]                              # (cout, K*cin)

        def act(v, _a=pre_alpha):
            return v if _a is None else jnp.where(v >= 0, v, _a * v)

        if K == 1:
            part = jnp.dot(w, act(raw_window(si, 0)),
                           preferred_element_type=jnp.float32)
        elif cin % 8 == 0:
            # fold all K taps into one deep contraction (K*cin rows)
            stacked = jnp.concatenate([raw_window(si, k * dil) for k in range(K)],
                                      axis=0)
            part = jnp.dot(w, act(stacked), preferred_element_type=jnp.float32)
        else:
            # tiny, sublane-unaligned Cin (in_channels / sine emb): per-tap dots
            part = jnp.zeros((cout, t_blk), jnp.float32)
            for k in range(K):
                part = part + jnp.dot(w[:, k * cin:(k + 1) * cin],
                                      act(raw_window(si, k * dil)),
                                      preferred_element_type=jnp.float32)
        acc = part if acc is None else acc + part

    acc = acc + b_ref[...]                               # (cout, 1) f32 broadcast
    if res_from_input:                                   # residual == stream-0 input
        acc = acc + raw_window(0, stream_meta[0][2]).astype(jnp.float32)
    for r in extra_res:
        acc = acc + r[0].astype(jnp.float32)
    if out_scale is not None:
        acc = acc * out_scale
    if post_alpha is not None:
        acc = jnp.where(acc >= 0, acc, post_alpha * acc)
    if post_tanh:
        acc = jnp.tanh(acc)
    o_ref[0] = acc.astype(o_ref.dtype)


def fused_conv(streams, bias, *, residuals=(), residual_from_input=False,
               out_scale=None, post_alpha=None, post_tanh=False,
               out_dtype=None, t_cap_override=None):
    """Fused multi-stream dilated conv1d.

    streams: list of (x (B, Cin, T), w_folded (Cout, K*Cin), K, dilation,
             pad_l, pad_r, pre_alpha-or-None).
    Output = sum of all stream convs + bias (+ input residual of stream 0 if
    residual_from_input) (+ extra residual arrays), scaled by out_scale, with
    optional post LeakyReLU / tanh.
    """
    x0, w0 = streams[0][0], streams[0][1]
    B = x0.shape[0]
    cout = w0.shape[0]
    if out_dtype is None:
        out_dtype = COMPUTE_DTYPE

    metas, t_outs, max_r = [], [], 0
    for (x, w, K, dil, padl, padr, pa) in streams:
        metas.append((K, dil, padl, padr, pa))
        t_outs.append(x.shape[2] + padl + padr - (K - 1) * dil)
        max_r = max(max_r, (K - 1) * dil)
    t_out = t_outs[0]
    assert all(t == t_out for t in t_outs), t_outs
    if residual_from_input:
        assert x0.shape[1] == cout and x0.shape[2] == t_out, (x0.shape, cout, t_out)

    residuals = list(residuals)
    for r in residuals:
        assert r.shape == (B, cout, t_out), (r.shape, (B, cout, t_out))

    bias_arg = jnp.asarray(bias, jnp.float32).reshape(cout, 1)
    t_cap = t_cap_override if t_cap_override is not None else \
        _pick_t_cap(streams, cout, len(residuals))
    tiled = t_out > t_cap

    if not tiled:
        # --- single time block per batch element (no XLA pad needed) ---------
        args, in_specs = [], []
        for (x, w, K, dil, padl, padr, pa) in streams:
            cin, t_in = x.shape[1], x.shape[2]
            args.append(x)
            in_specs.append(pl.BlockSpec((1, cin, t_in), lambda b: (b, 0, 0)))
        for st in streams:
            w = st[1]
            args.append(w)
            in_specs.append(pl.BlockSpec(w.shape, lambda b: (0, 0)))
        args.append(bias_arg)
        in_specs.append(pl.BlockSpec((cout, 1), lambda b: (0, 0)))
        for r in residuals:
            args.append(r)
            in_specs.append(pl.BlockSpec((1, cout, t_out), lambda b: (b, 0, 0)))

        kern = functools.partial(
            _fused_conv_kernel, stream_meta=tuple(metas), tiled=False,
            t_blk=t_out, n_extra_res=len(residuals),
            res_from_input=residual_from_input, out_scale=out_scale,
            post_alpha=post_alpha, post_tanh=post_tanh)
        return pl.pallas_call(
            kern,
            out_shape=jax.ShapeDtypeStruct((B, cout, t_out), out_dtype),
            grid=(B,),
            in_specs=in_specs,
            out_specs=pl.BlockSpec((1, cout, t_out), lambda b: (b, 0, 0)),
            compiler_params=pltpu.CompilerParams(
                dimension_semantics=("parallel",),
                vmem_limit_bytes=_VMEM_LIMIT),
        )(*args)

    # --- tiled path: grid=(B, n_t), main tile + halo block --------------------
    halo = 128 * max(1, -(-max_r // 128))          # halo covers the conv span
    t_tile = max(halo, (t_cap // halo) * halo)
    ratio = t_tile // halo
    n_t = -(-t_out // t_tile)
    t_pad_out = n_t * t_tile
    l_in = t_pad_out + halo

    args, in_specs = [], []
    for (x, w, K, dil, padl, padr, pa) in streams:
        cin, t_in = x.shape[1], x.shape[2]
        # TODO(synk): this per-conv XLA pad (one HBM pass) could be removed with
        # guard-banded layer outputs + clamped halo index_maps.
        xp = jnp.pad(x, ((0, 0), (0, 0), (padl, l_in - t_in - padl)))
        args.append(xp)
        in_specs.append(pl.BlockSpec((1, cin, t_tile), lambda b, t: (b, 0, t)))
        args.append(xp)   # same HBM buffer, viewed as halo-sized blocks
        in_specs.append(pl.BlockSpec((1, cin, halo),
                                     lambda b, t: (b, 0, (t + 1) * ratio)))
    for st in streams:
        w = st[1]
        args.append(w)
        in_specs.append(pl.BlockSpec(w.shape, lambda b, t: (0, 0)))
    args.append(bias_arg)
    in_specs.append(pl.BlockSpec((cout, 1), lambda b, t: (0, 0)))
    for r in residuals:
        rp = r if t_pad_out == t_out else \
            jnp.pad(r, ((0, 0), (0, 0), (0, t_pad_out - t_out)))
        args.append(rp)
        in_specs.append(pl.BlockSpec((1, cout, t_tile), lambda b, t: (b, 0, t)))

    kern = functools.partial(
        _fused_conv_kernel, stream_meta=tuple(metas), tiled=True,
        t_blk=t_tile, n_extra_res=len(residuals),
        res_from_input=residual_from_input, out_scale=out_scale,
        post_alpha=post_alpha, post_tanh=post_tanh)
    out = pl.pallas_call(
        kern,
        out_shape=jax.ShapeDtypeStruct((B, cout, t_pad_out), out_dtype),
        grid=(B, n_t),
        in_specs=in_specs,
        out_specs=pl.BlockSpec((1, cout, t_tile), lambda b, t: (b, 0, t)),
        compiler_params=pltpu.CompilerParams(
            dimension_semantics=("parallel", "parallel"),
            vmem_limit_bytes=_VMEM_LIMIT),
    )(*args)
    return out if t_pad_out == t_out else out[:, :, :t_out]


# ----------------------------------------------------------------------------
# Layer helpers built on the fused conv kernel.
# ----------------------------------------------------------------------------
def plain_conv(x, wkb, *, pre_alpha=None, post_alpha=None, post_tanh=False,
               out_dtype=None):
    """'same'-padded odd-kernel Conv1d with fused activations."""
    w, K, b = wkb
    pad = (K - 1) // 2
    return fused_conv([(x, w, K, 1, pad, pad, pre_alpha)], b,
                      post_alpha=post_alpha, post_tanh=post_tanh,
                      out_dtype=out_dtype)


def upsample(x, up, alpha, residual):
    """Sequential(LeakyReLU, ConvTranspose1d(stride=s)) as an exact polyphase
    stride-1 conv (K'=3, s*Cout phase-stacked outputs)."""
    V, K, b_s, s, cout = up
    y = fused_conv([(x, V, K, 1, 1, 1, alpha)], b_s)          # (B, s*cout, T)
    B, _, T = y.shape
    # TODO(synk): phase de-interleave left to XLA (it fuses with the residual
    # add); an in-kernel strided-store epilogue would remove this HBM pass.
    y = y.reshape(B, s, cout, T).transpose(0, 2, 3, 1).reshape(B, cout, T * s)
    return y + residual


def downsample(x, ds, alpha):
    """Sequential(Conv1d(stride=s, K=2s, pad=s-1), LeakyReLU) as an exact
    phase-split stride-1 conv (Cin*s channels, K'=2)."""
    W, K, b, s = ds
    B, cin, T = x.shape
    l_out = (T - 2) // s + 1                       # torch output length
    xp = jnp.pad(x, ((0, 0), (0, 0), (s - 1, s - 1)))
    need = s * (l_out + 1)
    cur = xp.shape[2]
    if cur < need:
        xp = jnp.pad(xp, ((0, 0), (0, 0), (0, need - cur)))
    elif cur > need:
        xp = xp[:, :, :need]
    xph = xp.reshape(B, cin, l_out + 1, s).transpose(0, 1, 3, 2)
    xph = xph.reshape(B, cin * s, l_out + 1)
    return fused_conv([(xph, W, K, 1, 0, 0, None)], b, post_alpha=alpha)


def _pd_gather_concat(x, d, dil):
    """Build the merged (B, 3C, T) input [x, x_past, x_future] for the C/P/F convs.
    # TODO(synk): pd_indexing approximated as round+clamp to [0, T-1]; the
    # pitch-dependent gathers stay in XLA instead of an in-kernel DMA gather.
    """
    B, C, T = x.shape
    off = d[:, 0, :].astype(jnp.float32) * float(dil)          # (B, T)
    t_idx = jnp.arange(T, dtype=jnp.float32)[None, :]
    idx_p = jnp.clip(jnp.round(t_idx - off), 0, T - 1).astype(jnp.int32)
    idx_f = jnp.clip(jnp.round(t_idx + off), 0, T - 1).astype(jnp.int32)
    gather = jax.vmap(lambda xb, ib: jnp.take(xb, ib, axis=1))
    x_p = gather(x, idx_p)
    x_f = gather(x, idx_f)
    return jnp.concatenate([x, x_p, x_f], axis=1)


def adaptive_resblock(x, d, blk, alpha):
    """AdaptiveResidualBlock: one fused (leaky + merged C/P/F 1x1) kernel and one
    fused (leaky + A conv + residual) kernel per dilation layer."""
    for layer in blk:
        xcat = _pd_gather_concat(x, d, layer['dil'])
        y = fused_conv([(xcat, layer['w_cpf'], 1, 1, 0, 0, alpha)],
                       layer['b_cpf'])
        w_a, K_a, b_a = layer['A']
        pad_a = (K_a - 1) // 2
        x = fused_conv([(y, w_a, K_a, 1, pad_a, pad_a, alpha)], b_a,
                       residuals=[x])
    return x


def resblock_fused(x, blk, alpha, cs_prev, out_scale):
    """HiFiGAN ResidualBlock (use_additional_convs=False); every conv re-reads
    its residual from its own input block, and the last conv also accumulates
    the running multi-block sum cs_prev and applies the 1/num_blocks scale."""
    n = len(blk)
    for idx, (dil, (w, K, b)) in enumerate(blk):
        pad = (K - 1) // 2 * dil
        last = idx == n - 1
        x = fused_conv(
            [(x, w, K, dil, pad, pad, alpha)], b,
            residual_from_input=True,
            residuals=[cs_prev] if (last and cs_prev is not None) else (),
            out_scale=out_scale if last else None)
    return x


# ----------------------------------------------------------------------------
# Parameter construction (deterministic synthetic weights in torch layouts,
# converted to folded kernel layouts).  weight_norm is a pure reparametrization
# and has no effect on the forward pass given effective weights.
# ----------------------------------------------------------------------------
class KeyGen:
    def __init__(self, seed):
        self.key = jax.random.PRNGKey(seed)

    def __call__(self):
        self.key, sub = jax.random.split(self.key)
        return sub


def conv_params_torch(kg, cout, cin, K):
    w = 0.01 * jax.random.normal(kg(), (cout, cin, K), jnp.float32)
    b = 0.01 * jax.random.normal(kg(), (cout,), jnp.float32)
    return w, b


def convtranspose_params_torch(kg, cin, cout, K):
    w = 0.01 * jax.random.normal(kg(), (cin, cout, K), jnp.float32)
    b = 0.01 * jax.random.normal(kg(), (cout,), jnp.float32)
    return w, b


def to_kernel_conv(w, b):
    """torch Conv1d weight (Cout, Cin, K) -> folded kernel weight (Cout, K*Cin)."""
    cout, cin, K = w.shape
    wf = jnp.transpose(w, (0, 2, 1)).reshape(cout, K * cin).astype(COMPUTE_DTYPE)
    return wf, K, b


def ct_to_polyphase(w_t, b, s):
    """torch ConvTranspose1d weight (Cin, Cout, K=2s), stride s,
    padding=s//2+s%2, output_padding=s%2 -> polyphase stride-1 conv weights
    (s*Cout, 3*Cin) so that phase-stacked output row r*Cout+co, column q equals
    y[co, s*q + r] of the transposed conv (verified by self-test)."""
    cin, cout, K = w_t.shape
    assert K == 2 * s
    p = s // 2 + s % 2
    V = jnp.zeros((3, s * cout, cin), jnp.float32)
    for r in range(s):
        g = (r + p) % s
        f = (r + p) // s
        V = V.at[f, r * cout:(r + 1) * cout, :].set(w_t[:, :, g + s].T)
        V = V.at[f + 1, r * cout:(r + 1) * cout, :].set(w_t[:, :, g].T)
    Vf = jnp.transpose(V, (1, 0, 2)).reshape(s * cout, 3 * cin).astype(COMPUTE_DTYPE)
    return Vf, 3, jnp.tile(b, s), s, cout


def ds_to_phase(w_t, b, s):
    """torch Conv1d weight (Cout, Cin, K=2s), stride s -> phase-split stride-1
    conv weight (Cout, 2*Cin*s) (verified by self-test)."""
    cout, cin, K = w_t.shape
    assert K == 2 * s
    W = w_t.reshape(cout, cin, 2, s).transpose(2, 0, 1, 3).reshape(2, cout, cin * s)
    Wf = jnp.transpose(W, (1, 0, 2)).reshape(cout, 2 * cin * s).astype(COMPUTE_DTYPE)
    return Wf, 2, b, s


def build_params(kg, in_channels, out_channels, channels, kernel_size,
                 scales, kernels, src_params, flt_params):
    n = len(scales)
    p = {'sn_upsamples': [], 'fn_upsamples': [], 'sn_blocks': [], 'fn_blocks': []}
    p['input_conv'] = to_kernel_conv(
        *conv_params_torch(kg, channels, in_channels, kernel_size))
    for i in range(n):
        cin = channels // 2 ** i
        cout = channels // 2 ** (i + 1)
        K, s = kernels[i], scales[i]
        assert K == 2 * s
        p['sn_upsamples'].append(
            ct_to_polyphase(*convtranspose_params_torch(kg, cin, cout, K), s))
        p['fn_upsamples'].append(
            ct_to_polyphase(*convtranspose_params_torch(kg, cin, cout, K), s))
        dils = src_params['resblock_dilations'][i]
        dils = tuple(dils) if isinstance(dils, (tuple, list)) else (dils,)
        k_a = src_params['resblock_kernel_size']
        blk = []
        for dil in dils:
            wc, bc = conv_params_torch(kg, cout, cout, 1)
            wp, bp = conv_params_torch(kg, cout, cout, 1)
            wf, bf = conv_params_torch(kg, cout, cout, 1)
            w_cpf = jnp.concatenate([wc[:, :, 0], wp[:, :, 0], wf[:, :, 0]],
                                    axis=1).astype(COMPUTE_DTYPE)   # (C, 3C)
            blk.append(dict(
                dil=dil, w_cpf=w_cpf, b_cpf=bc + bp + bf,
                A=to_kernel_conv(*conv_params_torch(kg, cout, cout, k_a))))
        p['sn_blocks'].append(blk)
        stage_fn = []
        for j, k in enumerate(flt_params['resblock_kernel_sizes']):
            fdils = flt_params['resblock_dilations'][j]
            stage_fn.append([(dil, to_kernel_conv(*conv_params_torch(kg, cout, cout, k)))
                             for dil in fdils])
        p['fn_blocks'].append(stage_fn)
    c_final = channels // 2 ** n
    p['sn_output_conv'] = to_kernel_conv(
        *conv_params_torch(kg, out_channels, c_final, kernel_size))
    p['fn_output_conv'] = to_kernel_conv(
        *conv_params_torch(kg, out_channels, c_final, kernel_size))
    p['sn_emb'] = to_kernel_conv(*conv_params_torch(kg, c_final, 1, kernel_size))
    p['sn_downsamples'] = []
    for i in reversed(range(n)):
        cin = channels // 2 ** (i + 1)
        cout = channels // 2 ** i
        p['sn_downsamples'].append(
            ds_to_phase(*conv_params_torch(kg, cout, cin, kernels[i]), scales[i]))
    return p


# ----------------------------------------------------------------------------
# Forward pass (matches SiFiGANDirectGenerator.forward, NCL layout throughout).
# ----------------------------------------------------------------------------
def sifigan_direct_forward(params, cfg, x, c, d):
    alpha = cfg['alpha']
    nup = cfg['num_upsamples']
    nblocks = cfg['num_filter_blocks']

    x = x.astype(COMPUTE_DTYPE)
    c = c.astype(COMPUTE_DTYPE)

    c = plain_conv(c, params['input_conv'])
    e = c
    x = plain_conv(x, params['sn_emb'])
    embs = [x]
    for i in range(nup - 1):
        x = downsample(x, params['sn_downsamples'][i], alpha)
        embs.append(x)

    embs2 = []
    for i in range(nup):
        e = upsample(e, params['sn_upsamples'][i], alpha, residual=embs[-i - 1])
        e = adaptive_resblock(e, d[i], params['sn_blocks'][i], alpha)
        embs2.append(e)
    e = plain_conv(e, params['sn_output_conv'], pre_alpha=0.01,   # nn.LeakyReLU()
                   out_dtype=jnp.float32)

    for i in range(nup):
        c = upsample(c, params['fn_upsamples'][i], alpha, residual=embs2[i])
        cs = None
        for j in range(nblocks):
            scale = (1.0 / nblocks) if j == nblocks - 1 else None
            cs = resblock_fused(c, params['fn_blocks'][i][j], alpha, cs, scale)
        c = cs
    c = plain_conv(c, params['fn_output_conv'], pre_alpha=0.01, post_tanh=True,
                   out_dtype=jnp.float32)
    return c, e


# ----------------------------------------------------------------------------
# Runtime self-checks: fused conv (single-block and tiled paths), polyphase
# ConvTranspose1d rewrite and phase-split strided conv vs pure-JAX references.
# ----------------------------------------------------------------------------
def _self_test_fused_conv():
    key = jax.random.PRNGKey(7)
    k1, k2, k3, k4 = jax.random.split(key, 4)
    B, cin, T, K, dil = 2, 8, 300, 3, 2
    cout = cin
    pad = (K - 1) // 2 * dil
    x = jax.random.normal(k1, (B, cin, T), jnp.float32).astype(COMPUTE_DTYPE)
    w_t = 0.05 * jax.random.normal(k2, (cout, cin, K), jnp.float32)
    b = 0.05 * jax.random.normal(k3, (cout,), jnp.float32)
    extra = jax.random.normal(k4, (B, cout, T), jnp.float32).astype(COMPUTE_DTYPE)
    wf, _, _ = to_kernel_conv(w_t, b)

    kwargs = dict(residual_from_input=True, residuals=[extra],
                  out_scale=0.5, post_alpha=0.1, out_dtype=jnp.float32)
    y1 = fused_conv([(x, wf, K, dil, pad, pad, 0.2)], b, **kwargs)
    y2 = fused_conv([(x, wf, K, dil, pad, pad, 0.2)], b, t_cap_override=128,
                    **kwargs)

    xf = x.astype(jnp.float32)
    xl = jnp.where(xf >= 0, xf, 0.2 * xf)
    xp = jnp.pad(xl, ((0, 0), (0, 0), (pad, pad)))
    ref = b[None, :, None] + xf + extra.astype(jnp.float32)
    for k in range(K):
        ref = ref + jnp.einsum('oc,bct->bot', w_t[:, :, k],
                               xp[:, :, k * dil:k * dil + T])
    ref = ref * 0.5
    ref = jnp.where(ref >= 0, ref, 0.1 * ref)

    assert bool(jnp.allclose(y1, ref, atol=3e-2, rtol=3e-2)), "single-block mismatch"
    assert bool(jnp.allclose(y2, ref, atol=3e-2, rtol=3e-2)), "tiled mismatch"


def _self_test_upsample():
    key = jax.random.PRNGKey(11)
    for s in (3, 2):
        k1, k2, k3, k4 = jax.random.split(jax.random.fold_in(key, s), 4)
        B, cin, cout, T, alpha = 2, 8, 8, 16, 0.1
        w_t = 0.05 * jax.random.normal(k1, (cin, cout, 2 * s), jnp.float32)
        b = 0.05 * jax.random.normal(k2, (cout,), jnp.float32)
        x = jax.random.normal(k3, (B, cin, T), jnp.float32)
        res = jax.random.normal(k4, (B, cout, T * s), jnp.float32)
        up = ct_to_polyphase(w_t, b, s)
        y = upsample(x.astype(COMPUTE_DTYPE), up, alpha, res.astype(COMPUTE_DTYPE))

        xl = jnp.where(x >= 0, x, alpha * x)
        p, op = s // 2 + s % 2, s % 2
        T_out = (T - 1) * s - 2 * p + 2 * s + op
        ref = jnp.zeros((B, cout, T_out), jnp.float32)
        base = jnp.arange(T) * s - p
        for k in range(2 * s):
            contrib = jnp.einsum('io,bit->bot', w_t[:, :, k], xl)
            pos = base + k
            valid = (pos >= 0) & (pos < T_out)
            ref = ref.at[:, :, jnp.clip(pos, 0, T_out - 1)].add(
                jnp.where(valid[None, None, :], contrib, 0.0))
        ref = ref + b[None, :, None] + res
        assert y.shape == ref.shape, (y.shape, ref.shape)
        assert bool(jnp.allclose(y.astype(jnp.float32), ref,
                                 atol=3e-2, rtol=3e-2)), f"upsample s={s}"


def _self_test_downsample():
    key = jax.random.PRNGKey(13)
    for s, T in ((3, 31), (2, 20)):
        k1, k2, k3 = jax.random.split(jax.random.fold_in(key, s), 3)
        B, cin, cout, alpha = 2, 8, 16, 0.1
        w_t = 0.05 * jax.random.normal(k1, (cout, cin, 2 * s), jnp.float32)
        b = 0.05 * jax.random.normal(k2, (cout,), jnp.float32)
        x = jax.random.normal(k3, (B, cin, T), jnp.float32)
        ds = ds_to_phase(w_t, b, s)
        y = downsample(x.astype(COMPUTE_DTYPE), ds, alpha)

        xp = jnp.pad(x, ((0, 0), (0, 0), (s - 1, s - 1)))
        l_out = (T - 2) // s + 1
        ref = jnp.zeros((B, cout, l_out), jnp.float32) + b[None, :, None]
        for j in range(2 * s):
            ref = ref + jnp.einsum('oc,bct->bot', w_t[:, :, j],
                                   xp[:, :, j:j + (l_out - 1) * s + 1:s])
        ref = jnp.where(ref >= 0, ref, alpha * ref)
        assert y.shape == (B, cout, l_out), y.shape
        assert bool(jnp.allclose(y.astype(jnp.float32), ref,
                                 atol=3e-2, rtol=3e-2)), f"downsample s={s}"


# ----------------------------------------------------------------------------
if __name__ == "__main__":
    _self_test_fused_conv()
    _self_test_upsample()
    _self_test_downsample()

    # Small configuration consistent with the module's constructor arguments.
    in_channels, out_channels, channels, kernel_size = 4, 1, 32, 7
    upsample_scales = (3, 2)
    upsample_kernel_sizes = (6, 4)              # == 2 * scales (module assertion)
    src_params = {'resblock_kernel_size': 3,
                  'resblock_dilations': [1, (1, 2), (1, 2, 4), (1, 2, 4, 8)],
                  'use_additional_convs': True}
    flt_params = {'resblock_kernel_sizes': (3, 5, 7),
                  'resblock_dilations': [(1, 3, 5), (1, 3, 5), (1, 3, 5)],
                  'use_additional_convs': False}

    params = build_params(KeyGen(1), in_channels, out_channels, channels,
                          kernel_size, upsample_scales, upsample_kernel_sizes,
                          src_params, flt_params)
    cfg = dict(num_upsamples=len(upsample_scales),
               num_filter_blocks=len(flt_params['resblock_kernel_sizes']),
               alpha=0.1)

    B, T0 = 2, 8
    total_up = 1
    for s in upsample_scales:
        total_up *= s
    Tfull = T0 * total_up                       # 48

    key = jax.random.PRNGKey(0)
    k1, k2, k3 = jax.random.split(key, 3)
    x = jax.random.normal(k1, (B, 1, Tfull), jnp.float32)          # sine signal
    c = jax.random.normal(k2, (B, in_channels, T0), jnp.float32)   # features
    d = []                                                         # dilation factors
    t = T0
    dkeys = jax.random.split(k3, len(upsample_scales))
    for i, s in enumerate(upsample_scales):
        t = t * s
        d.append(jax.random.uniform(dkeys[i], (B, 1, t), jnp.float32, 0.0, 3.0))

    fwd = jax.jit(lambda xx, cc, dd: sifigan_direct_forward(params, cfg, xx, cc, dd))
    out_c, out_e = fwd(x, c, d)
    jax.block_until_ready((out_c, out_e))
    assert out_c.shape == (B, out_channels, Tfull), out_c.shape
    assert out_e.shape == (B, out_channels, Tfull), out_e.shape
    assert bool(jnp.all(jnp.isfinite(out_c))) and bool(jnp.all(jnp.isfinite(out_e)))
    print("KERNEL_OK")
</pallas_src>

<mosaic_0001>
module attributes {stable_mosaic.version = 11 : i64} {
  func.func @_fused_conv_kernel(%arg0: i32, %arg1: memref<1x8x300xbf16, #tpu.memory_space<vmem>>, %arg2: memref<8x24xbf16, #tpu.memory_space<vmem>>, %arg3: memref<8x1xf32, #tpu.memory_space<vmem>>, %arg4: memref<1x8x300xbf16, #tpu.memory_space<vmem>>, %arg5: memref<1x8x300xf32, #tpu.memory_space<vmem>>) attributes {dimension_semantics = [#tpu.dimension_semantics<parallel>], iteration_bounds = array<i64: 2>, scalar_prefetch = 0 : i64, scratch_operands = 0 : i64, tpu.core_type = #tpu.core_type<tc>, window_params = [{transform_indices = @transform_0, window_bounds = array<i64: 1, 8, 300>}, {pipeline_mode = #tpu.pipeline_mode<synchronous>, transform_indices = @transform_1, window_bounds = array<i64: 8, 24>}, {pipeline_mode = #tpu.pipeline_mode<synchronous>, transform_indices = @transform_2, window_bounds = array<i64: 8, 1>}, {transform_indices = @transform_3, window_bounds = array<i64: 1, 8, 300>}, {transform_indices = @transform_4, window_bounds = array<i64: 1, 8, 300>}]} {
    %c0 = arith.constant 0 : index
    %c0_0 = arith.constant 0 : index
    %0 = vector.load %arg2[%c0, %c0_0] : memref<8x24xbf16, #tpu.memory_space<vmem>>, vector<8x24xbf16>
    %c0_1 = arith.constant 0 : index
    %c0_2 = arith.constant 0 : index
    %c0_3 = arith.constant 0 : index
    %1 = vector.load %arg1[%c0_1, %c0_2, %c0_3] : memref<1x8x300xbf16, #tpu.memory_space<vmem>>, vector<1x8x300xbf16>
    %2 = vector.shape_cast %1 : vector<1x8x300xbf16> to vector<8x300xbf16>
    %cst = arith.constant 0.000000e+00 : bf16
    %3 = vector.broadcast %cst : bf16 to vector<8x2xbf16>
    %4 = vector.extract_strided_slice %2 {offsets = [0, 0], sizes = [8, 298], strides = [1, 1]} : vector<8x300xbf16> to vector<8x298xbf16>
    %5 = tpu.concatenate %3, %4 in 1 : vector<8x2xbf16>, vector<8x298xbf16> -> vector<8x300xbf16>
    %c0_4 = arith.constant 0 : index
    %c0_5 = arith.constant 0 : index
    %c0_6 = arith.constant 0 : index
    %6 = vector.load %arg1[%c0_4, %c0_5, %c0_6] : memref<1x8x300xbf16, #tpu.memory_space<vmem>>, vector<1x8x300xbf16>
    %7 = vector.shape_cast %6 : vector<1x8x300xbf16> to vector<8x300xbf16>
    %c0_7 = arith.constant 0 : index
    %c0_8 = arith.constant 0 : index
    %c0_9 = arith.constant 0 : index
    %8 = vector.load %arg1[%c0_7, %c0_8, %c0_9] : memref<1x8x300xbf16, #tpu.memory_space<vmem>>, vector<1x8x300xbf16>
    %9 = vector.shape_cast %8 : vector<1x8x300xbf16> to vector<8x300xbf16>
    %10 = vector.extract_strided_slice %9 {offsets = [0, 2], sizes = [8, 298], strides = [1, 1]} : vector<8x300xbf16> to vector<8x298xbf16>
    %cst_10 = arith.constant 0.000000e+00 : bf16
    %11 = vector.broadcast %cst_10 : bf16 to vector<8x2xbf16>
    %12 = tpu.concatenate %10, %11 in 1 : vector<8x298xbf16>, vector<8x2xbf16> -> vector<8x300xbf16>
    %13 = tpu.concatenate %5, %7, %12 in 0 : vector<8x300xbf16>, vector<8x300xbf16>, vector<8x300xbf16> -> vector<24x300xbf16>
    %cst_11 = arith.constant 0.000000e+00 : bf16
    %14 = vector.broadcast %cst_11 : bf16 to vector<24x300xbf16>
    %15 = arith.cmpf oge, %13, %14 : vector<24x300xbf16>
    %cst_12 = arith.constant 2.001950e-01 : bf16
    %16 = vector.broadcast %cst_12 : bf16 to vector<24x300xbf16>
    %17 = arith.mulf %16, %13 : vector<24x300xbf16>
    %18 = arith.select %15, %13, %17 : vector<24x300xi1>, vector<24x300xbf16>
    %cst_13 = arith.constant dense<0.000000e+00> : vector<8x300xf32>
    %19 = tpu.matmul %0, %18, %cst_13 {dimension_numbers = #tpu.dot_dimension_numbers<[1], [0], [0], [1], [0, 0, 1, 1], [], []>} : vector<8x24xbf16>, vector<24x300xbf16>, vector<8x300xf32> -> vector<8x300xf32>
    %c0_14 = arith.constant 0 : index
    %c0_15 = arith.constant 0 : index
    %20 = vector.load %arg3[%c0_14, %c0_15] : memref<8x1xf32, #tpu.memory_space<vmem>>, vector<8x1xf32>
    %21 = vector.broadcast %20 : vector<8x1xf32> to vector<8x300xf32>
    %22 = arith.addf %19, %21 : vector<8x300xf32>
    %c0_16 = arith.constant 0 : index
    %c0_17 = arith.constant 0 : index
    %c0_18 = arith.constant 0 : index
    %23 = vector.load %arg1[%c0_16, %c0_17, %c0_18] : memref<1x8x300xbf16, #tpu.memory_space<vmem>>, vector<1x8x300xbf16>
    %24 = vector.shape_cast %23 : vector<1x8x300xbf16> to vector<8x300xbf16>
    %25 = arith.extf %24 : vector<8x300xbf16> to vector<8x300xf32>
    %26 = arith.addf %22, %25 : vector<8x300xf32>
    %c0_19 = arith.constant 0 : index
    %c0_20 = arith.constant 0 : index
    %c0_21 = arith.constant 0 : index
    %27 = vector.load %arg4[%c0_19, %c0_20, %c0_21] : memref<1x8x300xbf16, #tpu.memory_space<vmem>>, vector<1x8x300xbf16>
    %28 = vector.shape_cast %27 : vector<1x8x300xbf16> to vector<8x300xbf16>
    %29 = arith.extf %28 : vector<8x300xbf16> to vector<8x300xf32>
    %30 = arith.addf %26, %29 : vector<8x300xf32>
    %cst_22 = arith.constant 5.000000e-01 : f32
    %31 = vector.broadcast %cst_22 : f32 to vector<8x300xf32>
    %32 = arith.mulf %30, %31 : vector<8x300xf32>
    %cst_23 = arith.constant 0.000000e+00 : f32
    %33 = vector.broadcast %cst_23 : f32 to vector<8x300xf32>
    %34 = arith.cmpf oge, %32, %33 : vector<8x300xf32>
    %cst_24 = arith.constant 1.000000e-01 : f32
    %35 = vector.broadcast %cst_24 : f32 to vector<8x300xf32>
    %36 = arith.mulf %35, %32 : vector<8x300xf32>
    %37 = arith.select %34, %32, %36 : vector<8x300xi1>, vector<8x300xf32>
    %c0_25 = arith.constant 0 : index
    %c0_26 = arith.constant 0 : index
    %c0_27 = arith.constant 0 : index
    %38 = vector.load %arg5[%c0_25, %c0_26, %c0_27] : memref<1x8x300xf32, #tpu.memory_space<vmem>>, vector<1x8x300xf32>
    %39 = vector.shape_cast %38 : vector<1x8x300xf32> to vector<8x300xf32>
    %40 = vector.shape_cast %37 : vector<8x300xf32> to vector<1x8x300xf32>
    tpu.vector_store %arg5[%c0_25, %c0_26, %c0_27], %40 {strides = array<i32>} : memref<1x8x300xf32, #tpu.memory_space<vmem>>, vector<1x8x300xf32>,
    return
  }
  func.func @transform_0(%arg0: i32) -> (i32, i32, i32) {
    %c0_i32 = arith.constant 0 : i32
    %c0_i32_0 = arith.constant 0 : i32
    %c0_i32_1 = arith.constant 0 : i32
    return %arg0, %c0_i32, %c0_i32_0 : i32, i32, i32
  }
  func.func @transform_1(%arg0: i32) -> (i32, i32) {
    %c0_i32 = arith.constant 0 : i32
    %c0_i32_0 = arith.constant 0 : i32
    %c0_i32_1 = arith.constant 0 : i32
    return %c0_i32, %c0_i32_0 : i32, i32
  }
  func.func @transform_2(%arg0: i32) -> (i32, i32) {
    %c0_i32 = arith.constant 0 : i32
    %c0_i32_0 = arith.constant 0 : i32
    %c0_i32_1 = arith.constant 0 : i32
    return %c0_i32, %c0_i32_0 : i32, i32
  }
  func.func @transform_3(%arg0: i32) -> (i32, i32, i32) {
    %c0_i32 = arith.constant 0 : i32
    %c0_i32_0 = arith.constant 0 : i32
    %c0_i32_1 = arith.constant 0 : i32
    return %arg0, %c0_i32, %c0_i32_0 : i32, i32, i32
  }
  func.func @transform_4(%arg0: i32) -> (i32, i32, i32) {
    %c0_i32 = arith.constant 0 : i32
    %c0_i32_0 = arith.constant 0 : i32
    %c0_i32_1 = arith.constant 0 : i32
    return %arg0, %c0_i32, %c0_i32_0 : i32, i32, i32
  }
}

</mosaic_0001>

<llo_original>
// kernel: tpu_custom_call.1
$region0: #{tpu_custom_call.1}
  #allocation0 [shape = 'u32[]', space=smem, size = 0x4, offset = 0x4, fixed_abs, tag = 'smem constant byte address 0x4 - core index']
  #allocation1 [shape = 'u32[144,128]{1,0:T(1,128)}', space=vmem, size = 0x12000, scoped, tag = 'internal scratch']
  %s0 = inlined_call_operand.hbm [shape: bf16[2,8,300], index: 0, kind: input, shape index: {}]
  %s1 = inlined_call_operand.vmem [shape: bf16[8,24], index: 1, kind: input, shape index: {}]
  %s2 = inlined_call_operand.vmem [shape: f32[8,1], index: 2, kind: input, shape index: {}]
  %s3 = inlined_call_operand.hbm [shape: bf16[2,8,300], index: 3, kind: input, shape index: {}]
  %s4 = inlined_call_operand.hbm [shape: f32[2,8,300], index: 4, kind: output, shape index: {}]
  %s5 = sld [smem:[#allocation0]]
  $region57: #{tpu_custom_call.1} parent=0
    _
  %s7 = ssub.s32 1, %s5
  %s8 = scalar_select 0, %s7, %s5
  $region1: #{tpu_custom_call.1} parent=0
    #allocation2 [shape = 'u8[12288]{0}', space=vmem, size = 0x3000, scoped, tag = 'input window, operand 0']
    #allocation3 [shape = 's32[2]{0}', space=sflag, size = 0x8, scoped, tag = 'scoped memory for tpu_custom_call.1']
    #allocation4 [shape = 's32[2]{0}', space=sflag, size = 0x8, scoped, tag = 'scoped memory for tpu_custom_call.1']
    #allocation5 [shape = 'u8[12288]{0}', space=vmem, size = 0x3000, scoped, tag = 'input window, operand 3']
    #allocation6 [shape = 's32[2]{0}', space=sflag, size = 0x8, scoped, tag = 'scoped memory for tpu_custom_call.1']
    #allocation7 [shape = 'u8[24576]{0}', space=vmem, size = 0x6000, scoped, tag = 'output window, operand 0']
    %9 = vsyncpa [#allocation3], 0
    %s10 = scalar_lea.sflag [#allocation3], 1
    %11 = vsyncpa %s10, 0
    %12 = vsyncpa [#allocation6], 0
    %s13 = scalar_lea.sflag [#allocation6], 1
    %14 = vsyncpa %s13, 0
    %15 = vsyncpa [#allocation4], 0
    %s16 = scalar_lea.sflag [#allocation4], 1
    %17 = vsyncpa %s16, 0
    loop: start=0, step=1, limit=4
    $region2: #{tpu_custom_call.1} parent=1 // loop_pre_header
      _
    $region3: #{tpu_custom_call.1} parent=1 // loop_header
      %s19 = sphi 0, %s23
      %p20 = scmp.ge.s32.totalorder %s19, 4
      %s29 = sphi 0, %s31
      %s32 = sphi 0, %s29
      %s33 = sphi 0, %s32
      %s49 = sphi 0, %s33
      %s53 = sphi 0, %s53
      %s55 = sphi 0, %s53
      %s56 = sphi 0, %s55
      %s70 = sphi 0, %s56
      %s74 = sphi 0, %s74
      %s76 = sphi 0, %s74
      %s77 = sphi 0, %s76
      %s91 = sphi 0, %s77
      %s97 = sphi 0, %s99
      %s100 = sphi 0, %s97
      %s101 = sphi 0, %s100
      %s117 = sphi 0, %s101
      %s123 = sphi 0, %s125
      %s126 = sphi 0, %s123
      %s127 = sphi 0, %s126
      %s143 = sphi 0, %s127
    $region4: #{tpu_custom_call.1} parent=1 // loop_header_branch
      %22 = sbr.rel (%p20) target = $region8
    $region5: #{tpu_custom_call.1} parent=1 // loop_body
      %s24 = ssub.s32 %s19, 1
      %s25 = ssub.s32 %s19, 2
      %s26 = sadd.s32 %s19, 1
      %s27 = ssub.s32 %s19, %s26
      %p28 = scmp.eq.s32.totalorder %s27, 0
      %s30 = sadd.s32 %s29, 1
      %s31 = scalar_select %p28, %s29, %s30
      %p34 = pneg %p28
      %p35 = scmp.eq.s32.totalorder %s19, 1
      %p36 = por %p34, %p35
      %p37 = scmp.ne.s32.totalorder %s29, %s32
      %p38 = scmp.eq.s32.totalorder %s19, 0
      %p39 = por %p37, %p38
      %p40 = scmp.ne.s32.totalorder %s29, %s32
      %p41 = scmp.eq.s32.totalorder %s24, 1
      %p42 = por %p40, %p41
      %p43 = scmp.ne.s32.totalorder %s32, %s33
      %p44 = scmp.eq.s32.totalorder %s24, 0
      %p45 = por %p43, %p44
      %p46 = scmp.ne.s32.totalorder %s32, %s33
      %p47 = scmp.eq.s32.totalorder %s25, 1
      %p48 = por %p46, %p47
      %p50 = scmp.ne.s32.totalorder %s33, %s49
      %p51 = scmp.eq.s32.totalorder %s25, 0
      %p52 = por %p50, %p51
      %s54 = sadd.s32 %s53, 1
      %p57 = scmp.eq.s32.totalorder %s19, 1
      %p58 = scmp.ne.s32.totalorder %s53, %s55
      %p59 = scmp.eq.s32.totalorder %s19, 0
      %p60 = por %p58, %p59
      %p61 = scmp.ne.s32.totalorder %s53, %s55
      %p62 = scmp.eq.s32.totalorder %s24, 1
      %p63 = por %p61, %p62
      %p64 = scmp.ne.s32.totalorder %s55, %s56
      %p65 = scmp.eq.s32.totalorder %s24, 0
      %p66 = por %p64, %p65
      %p67 = scmp.ne.s32.totalorder %s55, %s56
      %p68 = scmp.eq.s32.totalorder %s25, 1
      %p69 = por %p67, %p68
      %p71 = scmp.ne.s32.totalorder %s56, %s70
      %p72 = scmp.eq.s32.totalorder %s25, 0
      %p73 = por %p71, %p72
      %s75 = sadd.s32 %s74, 1
      %p78 = scmp.eq.s32.totalorder %s19, 1
      %p79 = scmp.ne.s32.totalorder %s74, %s76
      %p80 = scmp.eq.s32.totalorder %s19, 0
      %p81 = por %p79, %p80
      %p82 = scmp.ne.s32.totalorder %s74, %s76
      %p83 = scmp.eq.s32.totalorder %s24, 1
      %p84 = por %p82, %p83
      %p85 = scmp.ne.s32.totalorder %s76, %s77
      %p86 = scmp.eq.s32.totalorder %s24, 0
      %p87 = por %p85, %p86
      %p88 = scmp.ne.s32.totalorder %s76, %s77
      %p89 = scmp.eq.s32.totalorder %s25, 1
      %p90 = por %p88, %p89
      %p92 = scmp.ne.s32.totalorder %s77, %s91
      %p93 = scmp.eq.s32.totalorder %s25, 0
      %p94 = por %p92, %p93
      %s95 = ssub.s32 %s19, %s26
      %p96 = scmp.eq.s32.totalorder %s95, 0
      %s98 = sadd.s32 %s97, 1
      %s99 = scalar_select %p96, %s97, %s98
      %p102 = pneg %p96
      %p103 = scmp.eq.s32.totalorder %s19, 1
      %p104 = por %p102, %p103
      %p105 = scmp.ne.s32.totalorder %s97, %s100
      %p106 = scmp.eq.s32.totalorder %s19, 0
      %p107 = por %p105, %p106
      %p108 = scmp.ne.s32.totalorder %s97, %s100
      %p109 = scmp.eq.s32.totalorder %s24, 1
      %p110 = por %p108, %p109
      %p111 = scmp.ne.s32.totalorder %s100, %s101
      %p112 = scmp.eq.s32.totalorder %s24, 0
      %p113 = por %p111, %p112
      %p114 = scmp.ne.s32.totalorder %s100, %s101
      %p115 = scmp.eq.s32.totalorder %s25, 1
      %p116 = por %p114, %p115
      %p118 = scmp.ne.s32.totalorder %s101, %s117
      %p119 = scmp.eq.s32.totalorder %s25, 0
      %p120 = por %p118, %p119
      %s121 = ssub.s32 %s19, %s26
      %p122 = scmp.eq.s32.totalorder %s121, 0
      %s124 = sadd.s32 %s123, 1
      %s125 = scalar_select %p122, %s123, %s124
      %p128 = pneg %p122
      %p129 = scmp.eq.s32.totalorder %s19, 1
      %p130 = por %p128, %p129
      %p131 = scmp.ne.s32.totalorder %s123, %s126
      %p132 = scmp.eq.s32.totalorder %s19, 0
      %p133 = por %p131, %p132
      %p134 = scmp.ne.s32.totalorder %s123, %s126
      %p135 = scmp.eq.s32.totalorder %s24, 1
      %p136 = por %p134, %p135
      %p137 = scmp.ne.s32.totalorder %s126, %s127
      %p138 = scmp.eq.s32.totalorder %s24, 0
      %p139 = por %p137, %p138
      %p140 = scmp.ne.s32.totalorder %s126, %s127
      %p141 = scmp.eq.s32.totalorder %s25, 1
      %p142 = por %p140, %p141
      %p144 = scmp.ne.s32.totalorder %s127, %s143
      %p145 = scmp.eq.s32.totalorder %s25, 0
      %p146 = por %p144, %p145
      %p147 = scmp.le.s32.totalorder 1, %s19
      %p148 = scmp.lt.s32.totalorder %s19, 3
      %p149 = pnand %p147, %p148
      %p150 = pneg %p149
      // Predicated region
      $region9: #{tpu_custom_call.1} parent=5 // pred_check
        _
      $region10: #{tpu_custom_call.1} parent=5 // pred_check_branch
        %152 = sbr.rel (%p149) target = $region12
      $region11: #{tpu_custom_call.1} parent=5 // pred_region
        %s153 = ssub.s32 %s19, 1
        // Predicated region
        $region13: #{tpu_custom_call.1} parent=11 // pred_check
          %p154 = pneg %p66
        $region14: #{tpu_custom_call.1} parent=11 // pred_check_branch
          %156 = sbr.rel (%p154) target = $region16
        $region15: #{tpu_custom_call.1} parent=11 // pred_region
          _
        $region16: #{tpu_custom_call.1} parent=11 // pred_fallthru
          _
        // Predicated region
        $region17: #{tpu_custom_call.1} parent=11 // pred_check
          %p157 = pneg %p87
        $region18: #{tpu_custom_call.1} parent=11 // pred_check_branch
          %159 = sbr.rel (%p157) target = $region20
        $region19: #{tpu_custom_call.1} parent=11 // pred_region
          _
        $region20: #{tpu_custom_call.1} parent=11 // pred_fallthru
          _
      $region12: #{tpu_custom_call.1} parent=5 // pred_fallthru
        _
      %p160 = scmp.lt.s32.totalorder %s19, 2
      // Predicated region
      $region21: #{tpu_custom_call.1} parent=5 // pred_check
        %p161 = pneg %p160
      $region22: #{tpu_custom_call.1} parent=5 // pred_check_branch
        %163 = sbr.rel (%p161) target = $region24
      $region23: #{tpu_custom_call.1} parent=5 // pred_region
        // Predicated region
        $region25: #{tpu_custom_call.1} parent=23 // pred_check
          %p164 = pneg %p39
        $region26: #{tpu_custom_call.1} parent=23 // pred_check_branch
          %166 = sbr.rel (%p164) target = $region28
        $region27: #{tpu_custom_call.1} parent=23 // pred_region
          %s167 = sand.u32 %s29, 1
          %s168 = scalar_lea.sflag [#allocation3], %s167
          %s169 = sand.u32 %s29, 1
          %s170 = smul.addr %s169, 12
          %s171 = scalar_lea.vmem [#allocation2], %s170
          %s173 = ssub.s32 192, 192
          %174 = vsyncadd %s168, %s173
          %s175 = smul.addr %s19, 3
          %s176 = smul.addr %s175, 64
          %s177 = scalar_lea.hbm %s0, %s176
          %s179 = sshll.u32 %s171, 4
          %s180 = int_to_ptr.vmem [resolvable:$true] %s179
          %182 = dma.hbm_to_vmem [thread:$0]  %s177, 192, %s180, %s168
        $region28: #{tpu_custom_call.1} parent=23 // pred_fallthru
          _
        // Predicated region
        $region29: #{tpu_custom_call.1} parent=23 // pred_check
          %p183 = pneg %p107
        $region30: #{tpu_custom_call.1} parent=23 // pred_check_branch
          %185 = sbr.rel (%p183) target = $region32
        $region31: #{tpu_custom_call.1} parent=23 // pred_region
          %s186 = sand.u32 %s97, 1
          %s187 = scalar_lea.sflag [#allocation6], %s186
          %s188 = sand.u32 %s97, 1
          %s189 = smul.addr %s188, 12
          %s190 = scalar_lea.vmem [#allocation5], %s189
          %s192 = ssub.s32 192, 192
          %193 = vsyncadd %s187, %s192
          %s194 = smul.addr %s19, 3
          %s195 = smul.addr %s194, 64
          %s196 = scalar_lea.hbm %s3, %s195
          %s198 = sshll.u32 %s190, 4
          %s199 = int_to_ptr.vmem [resolvable:$true] %s198
          %201 = dma.hbm_to_vmem [thread:$0]  %s196, 192, %s199, %s187
        $region32: #{tpu_custom_call.1} parent=23 // pred_fallthru
          _
      $region24: #{tpu_custom_call.1} parent=5 // pred_fallthru
        _
      %p202 = scmp.le.s32.totalorder 1, %s19
      %p203 = scmp.lt.s32.totalorder %s19, 3
      %p204 = pnand %p202, %p203
      %p205 = pneg %p204
      // Predicated region
      $region33: #{tpu_custom_call.1} parent=5 // pred_check
        _
      $region34: #{tpu_custom_call.1} parent=5 // pred_check_branch
        %207 = sbr.rel (%p204) target = $region36
      $region35: #{tpu_custom_call.1} parent=5 // pred_region
        %s208 = ssub.s32 %s19, 1
        %s209 = sand.u32 %s32, 1
        %s210 = scalar_lea.sflag [#allocation3], %s209
        %s211 = sand.u32 %s32, 1
        %s212 = smul.addr %s211, 12
        %s213 = scalar_lea.vmem [#allocation2], %s212
        // Predicated region
        $region37: #{tpu_custom_call.1} parent=35 // pred_check
          %p214 = pneg %p45
        $region38: #{tpu_custom_call.1} parent=35 // pred_check_branch
          %216 = sbr.rel (%p214) target = $region40
        $region39: #{tpu_custom_call.1} parent=35 // pred_region
          %217 = dma.done %s210, 192
        $region40: #{tpu_custom_call.1} parent=35 // pred_fallthru
          _
        %s218 = sand.u32 %s100, 1
        %s219 = scalar_lea.sflag [#allocation6], %s218
        %s220 = sand.u32 %s100, 1
        %s221 = smul.addr %s220, 12
        %s222 = scalar_lea.vmem [#allocation5], %s221
        // Predicated region
        $region41: #{tpu_custom_call.1} parent=35 // pred_check
          %p223 = pneg %p113
        $region42: #{tpu_custom_call.1} parent=35 // pred_check_branch
          %225 = sbr.rel (%p223) target = $region44
        $region43: #{tpu_custom_call.1} parent=35 // pred_region
          %226 = dma.done %s219, 192
        $region44: #{tpu_custom_call.1} parent=35 // pred_fallthru
          _
        %s227 = sand.u32 %s32, 1
        %s228 = scalar_lea.sflag [#allocation3], %s227
        %s229 = sand.u32 %s32, 1
        %s230 = smul.addr %s229, 12
        %s231 = scalar_lea.vmem [#allocation2], %s230
        %p232 = pneg %p45
        %p233 = pneg %p42
        %p234 = pneg %p66
        %p235 = pneg %p63
        %p236 = pneg %p87
        %p237 = pneg %p84
        %s238 = sand.u32 %s100, 1
        %s239 = scalar_lea.sflag [#allocation6], %s238
        %s240 = sand.u32 %s100, 1
        %s241 = smul.addr %s240, 12
        %s242 = scalar_lea.vmem [#allocation5], %s241
        %p243 = pneg %p113
        %p244 = pneg %p110
        %p245 = pneg %p139
        %p246 = pneg %p136
        %s247 = sand.u32 %s126, 1
        %s248 = scalar_lea.sflag [#allocation4], %s247
        %s249 = sand.u32 %s126, 1
        %s250 = smul.addr %s249, 24
        %s251 = scalar_lea.vmem [#allocation7], %s250
        %v254 = vld [vmem:[%s1] sm:$0xf]
        %v255 = vld [vmem:[%s213] sm:$0xff]
        %v256 = vld [vmem:[%s213 + $0x8] sm:$0xf]
        %v259 = vunpack.c.l.b16 %v255
        %v260 = vunpack.c.h.b16 %v255
        %v261 = vunpack.c.l.b16 %v256
        %v262 = vpack.c.b16 %v259, %v259
        %v263 = vpack.c.b16 %v260, %v260
        %v264 = vpack.c.b16 %v261, %v261
        %265 = vrot.lane.b32.xlu0 %v262, 2
        %v266 = vpop.permute.xlu0 %265
        %267 = vrot.lane.b32.xlu0 %v263, 2
        %v268 = vpop.permute.xlu0 %267
        %269 = vrot.lane.b32.xlu0 %v264, 2
        %v270 = vpop.permute.xlu0 %269
        %vm271 = vcmask 15360
        %v272 = vsel %vm271, %v266, %v268
        %v273 = vsel %vm271, %v268, %v270
        %vm274 = vcmask 15360
        %v277 = vsel %vm274, 0, %v266
        %278 = vrot.lane.b32.xlu0 %v262, 126
        %v279 = vpop.permute.xlu0 %278
        %280 = vrot.lane.b32.xlu0 %v263, 126
        %v281 = vpop.permute.xlu0 %280
        %282 = vrot.lane.b32.xlu0 %v264, 126
        %v283 = vpop.permute.xlu0 %282
        %vm284 = vcmask 1031168
        %v285 = vsel %vm284, %v279, %v281
        %v286 = vsel %vm284, %v281, %v283
        %vm289 = vcmask 343040
        %v291 = vsel %vm289, %v283, 0
        %vm293 = vcmask 1043456
        %v295 = vsel %vm293, %v277, %v262
        %v299 = vsel %vm293, %v272, %v263
        %v303 = vsel %vm293, %v273, %v264
        %vm305 = vcmp.ge.bf16.partialorder %v295, 0
        %vm306 = vcmp.ge.bf16.partialorder %v299, 0
        %vm307 = vcmp.ge.bf16.partialorder %v303, 0
        %vm308 = vcmp.ge.bf16.partialorder %v285, 0
        %vm309 = vcmp.ge.bf16.partialorder %v286, 0
        %vm310 = vcmp.ge.bf16.partialorder %v291, 0
        %v311 = vmul.bf16 %v295, 1045249613
        %v312 = vmul.bf16 %v299, 1045249613
        %v313 = vmul.bf16 %v303, 1045249613
        %v314 = vmul.bf16 %v285, 1045249613
        %v315 = vmul.bf16 %v286, 1045249613
        %v316 = vmul.bf16 %v291, 1045249613
        %v317 = vsel %vm305, %v295, %v311
        %v318 = vsel %vm306, %v299, %v312
        %v319 = vsel %vm307, %v303, %v313
        %v320 = vsel %vm308, %v285, %v314
        %v321 = vsel %vm309, %v286, %v315
        %v322 = vsel %vm310, %v291, %v316
        %v323 = vld [vmem:[%s2] sm:$0xff]
        %325 = vset.pattern.permute.xlu0 0
        %326 = vperm.xlu0 %325, %v323
        %v327 = vpop.permute.xlu0 %326
        %vm329 = vcmask 195584
        %v331 = vsel %vm329, %v254, 0
        %v334 = vsel %vm293, %v320, 0
        %v337 = vsel %vm293, %v321, 0
        %v340 = vsel %vm293, %v322, 0
        %342 = vmatprep.subr.bf16.mxu0 %v318
        %343 = vmatpush1.bf16.msra.mxu0 %v317
        %344 = vmatprep.subr.bf16.mxu0 %v337
        %345 = vmatpush1.bf16.msra.mxu0 %v334
        %346 = vmatprep.subr.bf16.mxu0 0
        %347 = vmatpush1.bf16.msra.mxu0 0
        %348 = vmatprep.subr.bf16.mxu0 0
        %349 = vmatpush1.bf16.msra.mxu0 0
        %350 = vmatprep.subr.bf16.mxu0 0
        %351 = vmatpush1.bf16.msra.mxu0 0
        %352 = vmatprep.subr.bf16.mxu0 0
        %353 = vmatpush1.bf16.msra.mxu0 0
        %354 = vmatprep.subr.bf16.mxu0 0
        %355 = vmatpush1.bf16.msra.mxu0 0
        %356 = vmatprep.subr.bf16.mxu0 0
        %357 = vmatpush1.bf16.msra.mxu0 0
        %358 = vmatprep.subr.bf16.mxu0 0
        %359 = vmatpush1.bf16.msra.mxu0 0
        %360 = vmatprep.subr.bf16.mxu0 0
        %361 = vmatpush1.bf16.msra.mxu0 0
        %362 = vmatprep.subr.bf16.mxu0 0
        %363 = vmatpush1.bf16.msra.mxu0 0
        %364 = vmatprep.subr.bf16.mxu0 0
        %365 = vmatpush1.bf16.msra.mxu0 0
        %366 = vmatprep.subr.bf16.mxu0 0
        %367 = vmatpush1.bf16.msra.mxu0 0
        %368 = vmatprep.subr.bf16.mxu0 0
        %369 = vmatpush1.bf16.msra.mxu0 0
        %370 = vmatprep.subr.bf16.mxu0 0
        %371 = vmatpush1.bf16.msra.mxu0 0
        %372 = vmatprep.subr.bf16.mxu0 0
        %373 = vmatpush1.bf16.msra.mxu0 0
        %374 = vmatprep.mubr.bf16.mxu0 0
        %375 = vmatmul.mubr.bf16.gmra.mrb[0].mxu0 %v331
        %v376 = vpop.f32.mrb[0].mxu0
        %v377 = vadd.f32 %v327, %v376
        %v378 = vpop.f32.mrb[0].mxu0
        %v379 = vadd.f32 %v327, %v378
        %v380 = vpop.f32.mrb[0].mxu0
        %v381 = vpop.f32.mrb[0].mxu0
        %382 = vdwg.mxu0
        %383 = vmatprep.subr.bf16.mxu0 0
        %384 = vmatpush1.bf16.msra.mxu0 %v319
        %385 = vmatprep.subr.bf16.mxu0 0
        %386 = vmatpush1.bf16.msra.mxu0 %v340
        %387 = vmatprep.subr.bf16.mxu0 0
        %388 = vmatpush1.bf16.msra.mxu0 0
        %389 = vmatprep.subr.bf16.mxu0 0
        %390 = vmatpush1.bf16.msra.mxu0 0
        %391 = vmatprep.subr.bf16.mxu0 0
        %392 = vmatpush1.bf16.msra.mxu0 0
        %393 = vmatprep.subr.bf16.mxu0 0
        %394 = vmatpush1.bf16.msra.mxu0 0
        %395 = vmatprep.subr.bf16.mxu0 0
        %396 = vmatpush1.bf16.msra.mxu0 0
        %397 = vmatprep.subr.bf16.mxu0 0
        %398 = vmatpush1.bf16.msra.mxu0 0
        %399 = vmatprep.subr.bf16.mxu0 0
        %400 = vmatpush1.bf16.msra.mxu0 0
        %401 = vmatprep.subr.bf16.mxu0 0
        %402 = vmatpush1.bf16.msra.mxu0 0
        %403 = vmatprep.subr.bf16.mxu0 0
        %404 = vmatpush1.bf16.msra.mxu0 0
        %405 = vmatprep.subr.bf16.mxu0 0
        %406 = vmatpush1.bf16.msra.mxu0 0
        %407 = vmatprep.subr.bf16.mxu0 0
        %408 = vmatpush1.bf16.msra.mxu0 0
        %409 = vmatprep.subr.bf16.mxu0 0
        %410 = vmatpush1.bf16.msra.mxu0 0
        %411 = vmatprep.subr.bf16.mxu0 0
        %412 = vmatpush1.bf16.msra.mxu0 0
        %413 = vmatprep.subr.bf16.mxu0 0
        %414 = vmatpush1.bf16.msra.mxu0 0
        %415 = vmatprep.mubr.bf16.mxu0 0
        %416 = vmatmul.mubr.bf16.gmra.mrb[0].mxu0 %v331
        %v417 = vpop.f32.mrb[0].mxu0
        %v418 = vadd.f32 %v327, %v417
        %v419 = vpop.f32.mrb[0].mxu0
        %v420 = vpop.f32.mrb[0].mxu0
        %v421 = vpop.f32.mrb[0].mxu0
        %422 = vdwg.mxu0
        %v423 = vunpack.c.l.bf16 %v255
        %v424 = vunpack.c.h.bf16 %v255
        %v425 = vunpack.c.l.bf16 %v256
        %v426 = vadd.f32 %v377, %v423
        %v427 = vadd.f32 %v379, %v424
        %v428 = vadd.f32 %v418, %v425
        %v429 = vld [vmem:[%s222] sm:$0xff]
        %v430 = vld [vmem:[%s222 + $0x8] sm:$0xf]
        %v431 = vunpack.c.l.bf16 %v429
        %v432 = vunpack.c.h.bf16 %v429
        %v433 = vunpack.c.l.bf16 %v430
        %v434 = vadd.f32 %v426, %v431
        %v435 = vadd.f32 %v427, %v432
        %v436 = vadd.f32 %v428, %v433
        %v437 = vmul.f32 %v434, 0.5
        %v438 = vmul.f32 %v435, 0.5
        %v439 = vmul.f32 %v436, 0.5
        %vm440 = vcmp.ge.f32.partialorder %v437, 0.0
        %vm441 = vcmp.ge.f32.partialorder %v438, 0.0
        %vm442 = vcmp.ge.f32.partialorder %v439, 0.0
        %v443 = vmul.f32 %v437, 0.1
        %v444 = vmul.f32 %v438, 0.1
        %v445 = vmul.f32 %v439, 0.1
        %v446 = vsel %vm440, %v437, %v443
        %v447 = vsel %vm441, %v438, %v444
        %v448 = vsel %vm442, %v439, %v445
        %449 = vst [vmem:[%s251] sm:$0xff] %v446
        %450 = vst [vmem:[%s251 + $0x8] sm:$0xff] %v447
        %vm451 = vcmask 359424
        %452 = vst.msk [vmem:[%s251 + $0x10] sm:$0xff] %vm451, %v448
        %s453 = sand.u32 %s126, 1
        %s454 = scalar_lea.sflag [#allocation4], %s453
        %s455 = sand.u32 %s126, 1
        %s456 = smul.addr %s455, 24
        %s457 = scalar_lea.vmem [#allocation7], %s456
        // Predicated region
        $region45: #{tpu_custom_call.1} parent=35 // pred_check
          %p458 = pneg %p136
        $region46: #{tpu_custom_call.1} parent=35 // pred_check_branch
          %460 = sbr.rel (%p458) target = $region48
        $region47: #{tpu_custom_call.1} parent=35 // pred_region
          %s462 = ssub.s32 384, 384
          %463 = vsyncadd %s454, %s462
          %s464 = smul.addr %s24, 3
          %s465 = smul.addr %s464, 128
          %s466 = scalar_lea.hbm %s4, %s465
          %s468 = sshll.u32 %s457, 4
          %s469 = int_to_ptr.vmem [resolvable:$true] %s468
          %471 = dma.vmem_to_hbm [thread:$0]  %s469, 384, %s466, %s454
        $region48: #{tpu_custom_call.1} parent=35 // pred_fallthru
          _
      $region36: #{tpu_custom_call.1} parent=5 // pred_fallthru
        _
      %p472 = scmp.le.s32.totalorder 2, %s19
      // Predicated region
      $region49: #{tpu_custom_call.1} parent=5 // pred_check
        %p473 = pneg %p472
      $region50: #{tpu_custom_call.1} parent=5 // pred_check_branch
        %475 = sbr.rel (%p473) target = $region52
      $region51: #{tpu_custom_call.1} parent=5 // pred_region
        %s476 = ssub.s32 %s19, 2
        // Predicated region
        $region53: #{tpu_custom_call.1} parent=51 // pred_check
          %p477 = pneg %p142
        $region54: #{tpu_custom_call.1} parent=51 // pred_check_branch
          %479 = sbr.rel (%p477) target = $region56
        $region55: #{tpu_custom_call.1} parent=51 // pred_region
          %s480 = sand.u32 %s127, 1
          %s481 = scalar_lea.sflag [#allocation4], %s480
          %s482 = sand.u32 %s127, 1
          %s483 = smul.addr %s482, 24
          %s484 = scalar_lea.vmem [#allocation7], %s483
          %485 = dma.done %s481, 384
        $region56: #{tpu_custom_call.1} parent=51 // pred_fallthru
          _
      $region52: #{tpu_custom_call.1} parent=5 // pred_fallthru
        _
    $region6: #{tpu_custom_call.1} parent=1 // loop_footer
      %s23 = sadd.s32 1, %s19
    $region7: #{tpu_custom_call.1} parent=1 // loop_footer_branch
      %18 = sbr.rel target = $region3
    $region8: #{tpu_custom_call.1} parent=1 // loop_exit
      _
    %486 = vsyncpa [#allocation3], 1
    %s487 = scalar_lea.sflag [#allocation3], 1
    %488 = vsyncpa %s487, 1
    %489 = vsyncpa [#allocation6], 1
    %s490 = scalar_lea.sflag [#allocation6], 1
    %491 = vsyncpa %s490, 1
    %492 = vsyncpa [#allocation4], 1
    %s493 = scalar_lea.sflag [#allocation4], 1
    %494 = vsyncpa %s493, 1

</llo_original>
